<compile_context>
chip_gen: v5e
topology: v5e:2x2
jax: 0.10.0
libtpu: 0.0.40
codegen_flags: <defaults>
</compile_context>

<pallas_src>
import functools

import jax
import jax.numpy as jnp
from jax.experimental import pallas as pl
from jax.experimental.pallas import tpu as pltpu


# ----------------------------- diffusion schedule -----------------------------
def make_beta_schedule_cosine(n_timestep, cosine_s=8e-3):
    timesteps = jnp.arange(n_timestep + 1, dtype=jnp.float32) / n_timestep + cosine_s
    alphas = timesteps / (1.0 + cosine_s) * (jnp.pi / 2.0)
    alphas = jnp.cos(alphas) ** 2
    alphas = alphas / alphas[0]
    betas = 1.0 - alphas[1:] / alphas[:-1]
    return jnp.clip(betas, 0.0, 0.999)


# --------------------------------- the kernel ---------------------------------
def _kernel(scales_ref, mask_ref, xT_ref, noiseT_ref,
            adjT_ref, adjT2_ref, rowsum_ref,
            wpT_ref, w1mT_ref, bpT_ref, b1T_ref, w2T_ref, b2T_ref,
            outT_ref):
    # diffusion scalars from SMEM (no padded VMEM tiles)
    a = scales_ref[0]            # sqrt(1 / cumprod(alpha))[t]  (matches PyTorch q_sample)
    s = scales_ref[1]            # sqrt(1 - cumprod(alpha))[t]

    xT = xT_ref[...]             # (C, Pt)  Pt = group*N columns on the lane axis
    nT = noiseT_ref[...]         # (C, Pt)

    # --- q_sample ---
    x_noisy = a * xT + s * nT                                                     # (C, Pt)

    # --- backbone graph conv folded into FineTuneModel.conv1 (wp = wm @ w1x) ---
    # TODO(synk): the ST-GCN `Model` backbone was not provided upstream; it is approximated
    # by one linear graph-conv layer, and the wm@w1x fold is only exact while it stays linear.
    t1 = jnp.dot(wpT_ref[...], x_noisy, preferred_element_type=jnp.float32)       # (H, Pt)

    # --- conv1 aggregation with the second propagation fused into adjT^2 ---
    # prop(bp + m*w1m) for node-constant features == rowsum * (bp + m*w1m)
    prop_bias = (bpT_ref[...] + w1mT_ref[...] * mask_ref[...]) * rowsum_ref[...]  # (H, Pt)
    enc = (jnp.dot(t1, adjT2_ref[...], preferred_element_type=jnp.float32)
           + prop_bias + b1T_ref[...])                                            # (H, Pt)

    # --- conv2 + tanh ---
    t2 = jnp.dot(w2T_ref[...], enc, preferred_element_type=jnp.float32)           # (C, Pt)
    dec = jnp.dot(t2, adjT_ref[...], preferred_element_type=jnp.float32) + b2T_ref[...]
    outT_ref[...] = jnp.tanh(dec).astype(outT_ref.dtype)                          # lane-dense store


# ------------------------ one-time (hoisted) preparation -----------------------
def precompute(adjacency, params, group):
    """Everything that only depends on (static) adjacency / params: run ONCE, not per step."""
    N = adjacency.shape[0]
    A = (adjacency != 0).astype(jnp.float32)
    A_hat = A + jnp.eye(N, dtype=jnp.float32)
    dinv = jax.lax.rsqrt(A_hat.sum(axis=-1))
    adj_norm = dinv[:, None] * A_hat * dinv[None, :]                 # (N, N)

    # Small resident block-diag adjacency tile for `group` (b,t) slices, plus its square
    # (fuses the two chained propagations into one matmul in the kernel hot path).
    adjT = jnp.kron(jnp.eye(group, dtype=jnp.float32), adj_norm.T)   # (Pt, Pt)
    adjT2 = adjT @ adjT                                              # (Pt, Pt)
    rowsum = jnp.tile(adj_norm.sum(axis=-1), group).reshape(1, group * N)  # (1, Pt)

    # Fold the (linear) backbone into conv1 and pre-transpose all weights.
    return dict(
        adjT=adjT, adjT2=adjT2, rowsum=rowsum,
        wpT=(params["wm"] @ params["w1x"]).T,     # (H, C)
        bpT=(params["bm"] @ params["w1x"]).T,     # (H, 1)
        w1mT=params["w1m"].T,                     # (H, 1)
        b1T=params["b1"].T,                       # (H, 1)
        w2T=params["w2"].T,                       # (C, H)
        b2T=params["b2"].T,                       # (C, 1)
    )


# --------------------------------- per-step path -------------------------------
@functools.partial(jax.jit, static_argnames=("group",))
def diffusion_predic_forward(x, mask, noise, t, prep, sqrt_recip_ac, sqrt_one_minus_ac, *, group):
    B, T, N, C = x.shape
    H = prep["wpT"].shape[0]
    P = B * T * N
    Pt = group * N
    assert P % Pt == 0, "group must divide B*T"
    num_tiles = P // Pt

    # Lane-dense activations: fused batch*hour*node axis -> lanes.
    # TODO(synk): at scale, produce/accept lane-major (C, P) activations upstream instead of
    # paying this extra HBM transpose pass per call.
    xT = x.reshape(P, C).T.astype(jnp.float32)                         # (C, P)
    noiseT = noise.reshape(P, C).T.astype(jnp.float32)                 # (C, P)
    mask_row = jnp.repeat(mask.astype(jnp.float32).reshape(B * T), N).reshape(1, P)

    scales = jnp.stack([sqrt_recip_ac[t], sqrt_one_minus_ac[t]]).astype(jnp.float32)  # (2,)

    smem = pl.BlockSpec(memory_space=pltpu.MemorySpace.SMEM)
    tiled = lambda shape: pl.BlockSpec(shape, lambda i: (0, i))        # streamed per grid step
    resident = lambda shape: pl.BlockSpec(shape, lambda i: (0, 0))     # DMA'd once, stays in VMEM

    outT = pl.pallas_call(
        _kernel,
        out_shape=jax.ShapeDtypeStruct((C, P), jnp.float32),
        grid=(num_tiles,),
        in_specs=[
            smem,                      # scales
            tiled((1, Pt)),            # mask_row
            tiled((C, Pt)),            # xT
            tiled((C, Pt)),            # noiseT
            resident((Pt, Pt)),        # adjT   (block-diag tile)
            resident((Pt, Pt)),        # adjT2  (fused double propagation)
            resident((1, Pt)),         # rowsum (propagation of node-constant bias)
            resident((H, C)),          # wpT
            resident((H, 1)),          # w1mT
            resident((H, 1)),          # bpT
            resident((H, 1)),          # b1T
            resident((C, H)),          # w2T
            resident((C, 1)),          # b2T
        ],
        out_specs=tiled((C, Pt)),
        compiler_params=pltpu.CompilerParams(
            dimension_semantics=("parallel",),       # independent (b,t) groups -> 2 TCs on v7x
            vmem_limit_bytes=32 * 1024 * 1024,       # explicit scoped-VMEM budget
        ),
    )(scales, mask_row, xT, noiseT,
      prep["adjT"], prep["adjT2"], prep["rowsum"],
      prep["wpT"], prep["w1mT"], prep["bpT"], prep["b1T"], prep["w2T"], prep["b2T"])

    return outT.T.reshape(B, T, N, C)


# --------------------------- pure-JAX reference (check) ------------------------
def reference(x, adjacency, mask, noise, t, params, sqrt_recip_ac, sqrt_one_minus_ac):
    N = adjacency.shape[0]
    A = (adjacency != 0).astype(jnp.float32)
    A_hat = A + jnp.eye(N, dtype=jnp.float32)
    dinv = jax.lax.rsqrt(A_hat.sum(axis=-1))
    adj_norm = dinv[:, None] * A_hat * dinv[None, :]

    a, s = sqrt_recip_ac[t], sqrt_one_minus_ac[t]
    x_noisy = a * x + s * noise

    prop = lambda f: jnp.einsum("ij,bhjf->bhif", adj_norm, f)
    x_recon = prop(x_noisy @ params["wm"]) + params["bm"]
    m = mask[:, :, None, None]
    h1 = x_recon @ params["w1x"] + m * params["w1m"]
    enc = prop(h1) + params["b1"]
    dec = prop(enc @ params["w2"]) + params["b2"]
    return jnp.tanh(dec)


if __name__ == "__main__":
    # batch, hours(seq), nodes, in_channels(=num_features), hidden
    B, T, N, C, H = 2, 8, 16, 4, 32
    GROUP = 8                      # (b,t) slices per grid step -> Pt = GROUP*N = 128 lane columns
    num_timesteps = 10

    key = jax.random.PRNGKey(0)
    ks = jax.random.split(key, 11)

    x = jax.random.normal(ks[0], (B, T, N, C), jnp.float32)
    noise = jax.random.normal(ks[1], (B, T, N, C), jnp.float32)   # deterministic q_sample noise
    adj_raw = (jax.random.uniform(ks[2], (N, N)) < 0.3).astype(jnp.float32)
    adjacency = jnp.maximum(adj_raw, adj_raw.T)
    mask = (jax.random.uniform(ks[3], (B, T)) < 0.5).astype(jnp.float32)

    def init(k, shape, fan_in):
        return (jax.random.normal(k, shape, jnp.float32) / jnp.sqrt(float(fan_in))).astype(jnp.float32)

    params = dict(
        wm=init(ks[4], (C, C), C),
        bm=jnp.zeros((1, C), jnp.float32),
        w1x=init(ks[5], (C, H), C + 1),
        w1m=init(ks[6], (1, H), C + 1),
        b1=init(ks[7], (1, H), H),
        w2=init(ks[8], (H, C), H),
        b2=init(ks[9], (1, C), C),
    )

    betas = make_beta_schedule_cosine(num_timesteps)
    alphas = 1.0 - betas
    ac = jnp.cumprod(alphas)
    sqrt_recip_ac = jnp.sqrt(1.0 / ac)
    sqrt_one_minus_ac = jnp.sqrt(1.0 - ac)

    # deterministic substitute for torch.randint timestep draw
    t = int(jax.random.randint(ks[10], (), 0, num_timesteps))

    # one-time prep (hoisted out of the per-step path)
    prep = jax.tree_util.tree_map(jax.block_until_ready, precompute(adjacency, params, GROUP))

    out = diffusion_predic_forward(x, mask, noise, t, prep,
                                   sqrt_recip_ac, sqrt_one_minus_ac, group=GROUP)
    out = jax.block_until_ready(out)

    ref = reference(x, adjacency, mask, noise, t, params, sqrt_recip_ac, sqrt_one_minus_ac)
    assert out.shape == (B, T, N, C)
    err = float(jnp.max(jnp.abs(out - ref)))
    assert jnp.allclose(out, ref, rtol=1e-4, atol=1e-4), err
    print("KERNEL_OK")
</pallas_src>

<mosaic_0001>
module attributes {stable_mosaic.version = 11 : i64} {
  func.func @_kernel(%arg0: i32, %arg1: memref<2xf32, #tpu.memory_space<smem>>, %arg2: memref<1x128xf32, #tpu.memory_space<vmem>>, %arg3: memref<4x128xf32, #tpu.memory_space<vmem>>, %arg4: memref<4x128xf32, #tpu.memory_space<vmem>>, %arg5: memref<128x128xf32, #tpu.memory_space<vmem>>, %arg6: memref<128x128xf32, #tpu.memory_space<vmem>>, %arg7: memref<1x128xf32, #tpu.memory_space<vmem>>, %arg8: memref<32x4xf32, #tpu.memory_space<vmem>>, %arg9: memref<32x1xf32, #tpu.memory_space<vmem>>, %arg10: memref<32x1xf32, #tpu.memory_space<vmem>>, %arg11: memref<32x1xf32, #tpu.memory_space<vmem>>, %arg12: memref<4x32xf32, #tpu.memory_space<vmem>>, %arg13: memref<4x1xf32, #tpu.memory_space<vmem>>, %arg14: memref<4x128xf32, #tpu.memory_space<vmem>>) attributes {dimension_semantics = [#tpu.dimension_semantics<parallel>], iteration_bounds = array<i64: 2>, scalar_prefetch = 0 : i64, scratch_operands = 0 : i64, tpu.core_type = #tpu.core_type<tc>, window_params = [{transform_indices = @transform_0, window_bounds = array<i64: 2>}, {transform_indices = @transform_1, window_bounds = array<i64: 1, 128>}, {transform_indices = @transform_2, window_bounds = array<i64: 4, 128>}, {transform_indices = @transform_3, window_bounds = array<i64: 4, 128>}, {pipeline_mode = #tpu.pipeline_mode<synchronous>, transform_indices = @transform_4, window_bounds = array<i64: 128, 128>}, {pipeline_mode = #tpu.pipeline_mode<synchronous>, transform_indices = @transform_5, window_bounds = array<i64: 128, 128>}, {pipeline_mode = #tpu.pipeline_mode<synchronous>, transform_indices = @transform_6, window_bounds = array<i64: 1, 128>}, {pipeline_mode = #tpu.pipeline_mode<synchronous>, transform_indices = @transform_7, window_bounds = array<i64: 32, 4>}, {pipeline_mode = #tpu.pipeline_mode<synchronous>, transform_indices = @transform_8, window_bounds = array<i64: 32, 1>}, {pipeline_mode = #tpu.pipeline_mode<synchronous>, transform_indices = @transform_9, window_bounds = array<i64: 32, 1>}, {pipeline_mode = #tpu.pipeline_mode<synchronous>, transform_indices = @transform_10, window_bounds = array<i64: 32, 1>}, {pipeline_mode = #tpu.pipeline_mode<synchronous>, transform_indices = @transform_11, window_bounds = array<i64: 4, 32>}, {pipeline_mode = #tpu.pipeline_mode<synchronous>, transform_indices = @transform_12, window_bounds = array<i64: 4, 1>}, {transform_indices = @transform_13, window_bounds = array<i64: 4, 128>}]} {
    %c0 = arith.constant 0 : index
    %0 = memref.load %arg1[%c0] : memref<2xf32, #tpu.memory_space<smem>>
    %c1 = arith.constant 1 : index
    %1 = memref.load %arg1[%c1] : memref<2xf32, #tpu.memory_space<smem>>
    %c0_0 = arith.constant 0 : index
    %c0_1 = arith.constant 0 : index
    %2 = vector.load %arg3[%c0_0, %c0_1] : memref<4x128xf32, #tpu.memory_space<vmem>>, vector<4x128xf32>
    %c0_2 = arith.constant 0 : index
    %c0_3 = arith.constant 0 : index
    %3 = vector.load %arg4[%c0_2, %c0_3] : memref<4x128xf32, #tpu.memory_space<vmem>>, vector<4x128xf32>
    %4 = vector.broadcast %0 : f32 to vector<4x128xf32>
    %5 = arith.mulf %4, %2 : vector<4x128xf32>
    %6 = vector.broadcast %1 : f32 to vector<4x128xf32>
    %7 = arith.mulf %6, %3 : vector<4x128xf32>
    %8 = arith.addf %5, %7 : vector<4x128xf32>
    %c0_4 = arith.constant 0 : index
    %c0_5 = arith.constant 0 : index
    %9 = vector.load %arg8[%c0_4, %c0_5] : memref<32x4xf32, #tpu.memory_space<vmem>>, vector<32x4xf32>
    %cst = arith.constant dense<0.000000e+00> : vector<32x128xf32>
    %10 = tpu.matmul %9, %8, %cst {dimension_numbers = #tpu.dot_dimension_numbers<[1], [0], [0], [1], [0, 0, 1, 1], [], []>} : vector<32x4xf32>, vector<4x128xf32>, vector<32x128xf32> -> vector<32x128xf32>
    %c0_6 = arith.constant 0 : index
    %c0_7 = arith.constant 0 : index
    %11 = vector.load %arg10[%c0_6, %c0_7] : memref<32x1xf32, #tpu.memory_space<vmem>>, vector<32x1xf32>
    %c0_8 = arith.constant 0 : index
    %c0_9 = arith.constant 0 : index
    %12 = vector.load %arg9[%c0_8, %c0_9] : memref<32x1xf32, #tpu.memory_space<vmem>>, vector<32x1xf32>
    %c0_10 = arith.constant 0 : index
    %c0_11 = arith.constant 0 : index
    %13 = vector.load %arg2[%c0_10, %c0_11] : memref<1x128xf32, #tpu.memory_space<vmem>>, vector<1x128xf32>
    %14 = vector.broadcast %12 : vector<32x1xf32> to vector<32x128xf32>
    %15 = vector.broadcast %13 : vector<1x128xf32> to vector<32x128xf32>
    %16 = arith.mulf %14, %15 : vector<32x128xf32>
    %17 = vector.broadcast %11 : vector<32x1xf32> to vector<32x128xf32>
    %18 = arith.addf %17, %16 : vector<32x128xf32>
    %c0_12 = arith.constant 0 : index
    %c0_13 = arith.constant 0 : index
    %19 = vector.load %arg7[%c0_12, %c0_13] : memref<1x128xf32, #tpu.memory_space<vmem>>, vector<1x128xf32>
    %20 = vector.broadcast %19 : vector<1x128xf32> to vector<32x128xf32>
    %21 = arith.mulf %18, %20 : vector<32x128xf32>
    %c0_14 = arith.constant 0 : index
    %c0_15 = arith.constant 0 : index
    %22 = vector.load %arg6[%c0_14, %c0_15] : memref<128x128xf32, #tpu.memory_space<vmem>>, vector<128x128xf32>
    %cst_16 = arith.constant dense<0.000000e+00> : vector<32x128xf32>
    %23 = tpu.matmul %10, %22, %cst_16 {dimension_numbers = #tpu.dot_dimension_numbers<[1], [0], [0], [1], [0, 0, 1, 1], [], []>} : vector<32x128xf32>, vector<128x128xf32>, vector<32x128xf32> -> vector<32x128xf32>
    %24 = arith.addf %23, %21 : vector<32x128xf32>
    %c0_17 = arith.constant 0 : index
    %c0_18 = arith.constant 0 : index
    %25 = vector.load %arg11[%c0_17, %c0_18] : memref<32x1xf32, #tpu.memory_space<vmem>>, vector<32x1xf32>
    %26 = vector.broadcast %25 : vector<32x1xf32> to vector<32x128xf32>
    %27 = arith.addf %24, %26 : vector<32x128xf32>
    %c0_19 = arith.constant 0 : index
    %c0_20 = arith.constant 0 : index
    %28 = vector.load %arg12[%c0_19, %c0_20] : memref<4x32xf32, #tpu.memory_space<vmem>>, vector<4x32xf32>
    %cst_21 = arith.constant dense<0.000000e+00> : vector<4x128xf32>
    %29 = tpu.matmul %28, %27, %cst_21 {dimension_numbers = #tpu.dot_dimension_numbers<[1], [0], [0], [1], [0, 0, 1, 1], [], []>} : vector<4x32xf32>, vector<32x128xf32>, vector<4x128xf32> -> vector<4x128xf32>
    %c0_22 = arith.constant 0 : index
    %c0_23 = arith.constant 0 : index
    %30 = vector.load %arg5[%c0_22, %c0_23] : memref<128x128xf32, #tpu.memory_space<vmem>>, vector<128x128xf32>
    %cst_24 = arith.constant dense<0.000000e+00> : vector<4x128xf32>
    %31 = tpu.matmul %29, %30, %cst_24 {dimension_numbers = #tpu.dot_dimension_numbers<[1], [0], [0], [1], [0, 0, 1, 1], [], []>} : vector<4x128xf32>, vector<128x128xf32>, vector<4x128xf32> -> vector<4x128xf32>
    %c0_25 = arith.constant 0 : index
    %c0_26 = arith.constant 0 : index
    %32 = vector.load %arg13[%c0_25, %c0_26] : memref<4x1xf32, #tpu.memory_space<vmem>>, vector<4x1xf32>
    %33 = vector.broadcast %32 : vector<4x1xf32> to vector<4x128xf32>
    %34 = arith.addf %31, %33 : vector<4x128xf32>
    %35 = math.tanh %34 : vector<4x128xf32>
    %c0_27 = arith.constant 0 : index
    %c0_28 = arith.constant 0 : index
    %36 = vector.load %arg14[%c0_27, %c0_28] : memref<4x128xf32, #tpu.memory_space<vmem>>, vector<4x128xf32>
    tpu.vector_store %arg14[%c0_27, %c0_28], %35 {strides = array<i32>} : memref<4x128xf32, #tpu.memory_space<vmem>>, vector<4x128xf32>,
    return
  }
  func.func @transform_0(%arg0: i32) -> i32 {
    %c0_i32 = arith.constant 0 : i32
    %c0_i32_0 = arith.constant 0 : i32
    return %c0_i32 : i32
  }
  func.func @transform_1(%arg0: i32) -> (i32, i32) {
    %c0_i32 = arith.constant 0 : i32
    %c0_i32_0 = arith.constant 0 : i32
    return %c0_i32, %arg0 : i32, i32
  }
  func.func @transform_2(%arg0: i32) -> (i32, i32) {
    %c0_i32 = arith.constant 0 : i32
    %c0_i32_0 = arith.constant 0 : i32
    return %c0_i32, %arg0 : i32, i32
  }
  func.func @transform_3(%arg0: i32) -> (i32, i32) {
    %c0_i32 = arith.constant 0 : i32
    %c0_i32_0 = arith.constant 0 : i32
    return %c0_i32, %arg0 : i32, i32
  }
  func.func @transform_4(%arg0: i32) -> (i32, i32) {
    %c0_i32 = arith.constant 0 : i32
    %c0_i32_0 = arith.constant 0 : i32
    %c0_i32_1 = arith.constant 0 : i32
    return %c0_i32, %c0_i32_0 : i32, i32
  }
  func.func @transform_5(%arg0: i32) -> (i32, i32) {
    %c0_i32 = arith.constant 0 : i32
    %c0_i32_0 = arith.constant 0 : i32
    %c0_i32_1 = arith.constant 0 : i32
    return %c0_i32, %c0_i32_0 : i32, i32
  }
  func.func @transform_6(%arg0: i32) -> (i32, i32) {
    %c0_i32 = arith.constant 0 : i32
    %c0_i32_0 = arith.constant 0 : i32
    %c0_i32_1 = arith.constant 0 : i32
    return %c0_i32, %c0_i32_0 : i32, i32
  }
  func.func @transform_7(%arg0: i32) -> (i32, i32) {
    %c0_i32 = arith.constant 0 : i32
    %c0_i32_0 = arith.constant 0 : i32
    %c0_i32_1 = arith.constant 0 : i32
    return %c0_i32, %c0_i32_0 : i32, i32
  }
  func.func @transform_8(%arg0: i32) -> (i32, i32) {
    %c0_i32 = arith.constant 0 : i32
    %c0_i32_0 = arith.constant 0 : i32
    %c0_i32_1 = arith.constant 0 : i32
    return %c0_i32, %c0_i32_0 : i32, i32
  }
  func.func @transform_9(%arg0: i32) -> (i32, i32) {
    %c0_i32 = arith.constant 0 : i32
    %c0_i32_0 = arith.constant 0 : i32
    %c0_i32_1 = arith.constant 0 : i32
    return %c0_i32, %c0_i32_0 : i32, i32
  }
  func.func @transform_10(%arg0: i32) -> (i32, i32) {
    %c0_i32 = arith.constant 0 : i32
    %c0_i32_0 = arith.constant 0 : i32
    %c0_i32_1 = arith.constant 0 : i32
    return %c0_i32, %c0_i32_0 : i32, i32
  }
  func.func @transform_11(%arg0: i32) -> (i32, i32) {
    %c0_i32 = arith.constant 0 : i32
    %c0_i32_0 = arith.constant 0 : i32
    %c0_i32_1 = arith.constant 0 : i32
    return %c0_i32, %c0_i32_0 : i32, i32
  }
  func.func @transform_12(%arg0: i32) -> (i32, i32) {
    %c0_i32 = arith.constant 0 : i32
    %c0_i32_0 = arith.constant 0 : i32
    %c0_i32_1 = arith.constant 0 : i32
    return %c0_i32, %c0_i32_0 : i32, i32
  }
  func.func @transform_13(%arg0: i32) -> (i32, i32) {
    %c0_i32 = arith.constant 0 : i32
    %c0_i32_0 = arith.constant 0 : i32
    return %c0_i32, %arg0 : i32, i32
  }
}

</mosaic_0001>

<llo_original>
// kernel: diffusion_predic_forward.1
$region0: #{diffusion_predic_forward.1}
  #allocation0 [shape = 'u32[]', space=smem, size = 0x4, offset = 0x4, fixed_abs, tag = 'smem constant byte address 0x4 - core index']
  #allocation1 [shape = 'u32[72,128]{1,0:T(1,128)}', space=vmem, size = 0x9000, scoped, tag = 'internal scratch']
  %s0 = inlined_call_operand.vmem [shape: f32[2], index: 0, kind: input, shape index: {}]
  %s1 = inlined_call_operand.vmem [shape: f32[1,256], index: 1, kind: input, shape index: {}]
  %s2 = inlined_call_operand.vmem [shape: f32[4,256], index: 2, kind: input, shape index: {}]
  %s3 = inlined_call_operand.vmem [shape: f32[4,256], index: 3, kind: input, shape index: {}]
  %s4 = inlined_call_operand.vmem [shape: f32[128,128], index: 4, kind: input, shape index: {}]
  %s5 = inlined_call_operand.vmem [shape: f32[128,128], index: 5, kind: input, shape index: {}]
  %s6 = inlined_call_operand.vmem [shape: f32[1,128], index: 6, kind: input, shape index: {}]
  %s7 = inlined_call_operand.vmem [shape: f32[32,4], index: 7, kind: input, shape index: {}]
  %s8 = inlined_call_operand.vmem [shape: f32[32,1], index: 8, kind: input, shape index: {}]
  %s9 = inlined_call_operand.vmem [shape: f32[32,1], index: 9, kind: input, shape index: {}]
  %s10 = inlined_call_operand.vmem [shape: f32[32,1], index: 10, kind: input, shape index: {}]
  %s11 = inlined_call_operand.vmem [shape: f32[4,32], index: 11, kind: input, shape index: {}]
  %s12 = inlined_call_operand.vmem [shape: f32[4,1], index: 12, kind: input, shape index: {}]
  %s13 = inlined_call_operand.vmem [shape: f32[4,256], index: 13, kind: output, shape index: {}]
  %s14 = sld [smem:[#allocation0]]
  $region89: #{diffusion_predic_forward.1} parent=0
    _
  %s16 = ssub.s32 1, %s14
  %s17 = scalar_select 0, %s16, %s14
  $region1: #{diffusion_predic_forward.1} parent=0
    #allocation2 [shape = 'u8[512]{0}', space=smem, size = 0x200, scoped, tag = 'input window, operand 0, single buffered']
    #allocation3 [shape = 's32[2]{0}', space=sflag, size = 0x8, scoped, tag = 'scoped memory for diffusion_predic_forward.1']
    %18 = vsyncpa [#allocation3], 0
    loop: start=0, step=1, limit=4
    $region2: #{diffusion_predic_forward.1} parent=1 // loop_pre_header
      _
    $region3: #{diffusion_predic_forward.1} parent=1 // loop_header
      %s20 = sphi 0, %s24
      %p21 = scmp.ge.s32.totalorder %s20, 4
      %s28 = sphi 0, %s28
      %s30 = sphi 0, %s28
      %s31 = sphi 0, %s30
      %s45 = sphi 0, %s31
      %s51 = sphi 0, %s53
      %s54 = sphi 0, %s51
      %s55 = sphi 0, %s54
      %s71 = sphi 0, %s55
      %s77 = sphi 0, %s79
      %s80 = sphi 0, %s77
      %s81 = sphi 0, %s80
      %s97 = sphi 0, %s81
      %s103 = sphi 0, %s105
      %s106 = sphi 0, %s103
      %s107 = sphi 0, %s106
      %s123 = sphi 0, %s107
      %s127 = sphi 0, %s127
      %s129 = sphi 0, %s127
      %s130 = sphi 0, %s129
      %s144 = sphi 0, %s130
      %s148 = sphi 0, %s148
      %s150 = sphi 0, %s148
      %s151 = sphi 0, %s150
      %s165 = sphi 0, %s151
      %s169 = sphi 0, %s169
      %s171 = sphi 0, %s169
      %s172 = sphi 0, %s171
      %s186 = sphi 0, %s172
      %s190 = sphi 0, %s190
      %s192 = sphi 0, %s190
      %s193 = sphi 0, %s192
      %s207 = sphi 0, %s193
      %s211 = sphi 0, %s211
      %s213 = sphi 0, %s211
      %s214 = sphi 0, %s213
      %s228 = sphi 0, %s214
      %s232 = sphi 0, %s232
      %s234 = sphi 0, %s232
      %s235 = sphi 0, %s234
      %s249 = sphi 0, %s235
      %s253 = sphi 0, %s253
      %s255 = sphi 0, %s253
      %s256 = sphi 0, %s255
      %s270 = sphi 0, %s256
      %s274 = sphi 0, %s274
      %s276 = sphi 0, %s274
      %s277 = sphi 0, %s276
      %s291 = sphi 0, %s277
      %s295 = sphi 0, %s295
      %s297 = sphi 0, %s295
      %s298 = sphi 0, %s297
      %s312 = sphi 0, %s298
      %s318 = sphi 0, %s320
      %s321 = sphi 0, %s318
      %s322 = sphi 0, %s321
      %s338 = sphi 0, %s322
    $region4: #{diffusion_predic_forward.1} parent=1 // loop_header_branch
      %23 = sbr.rel (%p21) target = $region8
    $region5: #{diffusion_predic_forward.1} parent=1 // loop_body
      %s25 = ssub.s32 %s20, 1
      %s26 = ssub.s32 %s20, 2
      %s27 = sadd.s32 %s20, 1
      %s29 = sadd.s32 %s28, 1
      %p32 = scmp.eq.s32.totalorder %s20, 1
      %p33 = scmp.ne.s32.totalorder %s28, %s30
      %p34 = scmp.eq.s32.totalorder %s20, 0
      %p35 = por %p33, %p34
      %p36 = scmp.ne.s32.totalorder %s28, %s30
      %p37 = scmp.eq.s32.totalorder %s25, 1
      %p38 = por %p36, %p37
      %p39 = scmp.ne.s32.totalorder %s30, %s31
      %p40 = scmp.eq.s32.totalorder %s25, 0
      %p41 = por %p39, %p40
      %p42 = scmp.ne.s32.totalorder %s30, %s31
      %p43 = scmp.eq.s32.totalorder %s26, 1
      %p44 = por %p42, %p43
      %p46 = scmp.ne.s32.totalorder %s31, %s45
      %p47 = scmp.eq.s32.totalorder %s26, 0
      %p48 = por %p46, %p47
      %s49 = ssub.s32 %s20, %s27
      %p50 = scmp.eq.s32.totalorder %s49, 0
      %s52 = sadd.s32 %s51, 1
      %s53 = scalar_select %p50, %s51, %s52
      %p56 = pneg %p50
      %p57 = scmp.eq.s32.totalorder %s20, 1
      %p58 = por %p56, %p57
      %p59 = scmp.ne.s32.totalorder %s51, %s54
      %p60 = scmp.eq.s32.totalorder %s20, 0
      %p61 = por %p59, %p60
      %p62 = scmp.ne.s32.totalorder %s51, %s54
      %p63 = scmp.eq.s32.totalorder %s25, 1
      %p64 = por %p62, %p63
      %p65 = scmp.ne.s32.totalorder %s54, %s55
      %p66 = scmp.eq.s32.totalorder %s25, 0
      %p67 = por %p65, %p66
      %p68 = scmp.ne.s32.totalorder %s54, %s55
      %p69 = scmp.eq.s32.totalorder %s26, 1
      %p70 = por %p68, %p69
      %p72 = scmp.ne.s32.totalorder %s55, %s71
      %p73 = scmp.eq.s32.totalorder %s26, 0
      %p74 = por %p72, %p73
      %s75 = ssub.s32 %s20, %s27
      %p76 = scmp.eq.s32.totalorder %s75, 0
      %s78 = sadd.s32 %s77, 1
      %s79 = scalar_select %p76, %s77, %s78
      %p82 = pneg %p76
      %p83 = scmp.eq.s32.totalorder %s20, 1
      %p84 = por %p82, %p83
      %p85 = scmp.ne.s32.totalorder %s77, %s80
      %p86 = scmp.eq.s32.totalorder %s20, 0
      %p87 = por %p85, %p86
      %p88 = scmp.ne.s32.totalorder %s77, %s80
      %p89 = scmp.eq.s32.totalorder %s25, 1
      %p90 = por %p88, %p89
      %p91 = scmp.ne.s32.totalorder %s80, %s81
      %p92 = scmp.eq.s32.totalorder %s25, 0
      %p93 = por %p91, %p92
      %p94 = scmp.ne.s32.totalorder %s80, %s81
      %p95 = scmp.eq.s32.totalorder %s26, 1
      %p96 = por %p94, %p95
      %p98 = scmp.ne.s32.totalorder %s81, %s97
      %p99 = scmp.eq.s32.totalorder %s26, 0
      %p100 = por %p98, %p99
      %s101 = ssub.s32 %s20, %s27
      %p102 = scmp.eq.s32.totalorder %s101, 0
      %s104 = sadd.s32 %s103, 1
      %s105 = scalar_select %p102, %s103, %s104
      %p108 = pneg %p102
      %p109 = scmp.eq.s32.totalorder %s20, 1
      %p110 = por %p108, %p109
      %p111 = scmp.ne.s32.totalorder %s103, %s106
      %p112 = scmp.eq.s32.totalorder %s20, 0
      %p113 = por %p111, %p112
      %p114 = scmp.ne.s32.totalorder %s103, %s106
      %p115 = scmp.eq.s32.totalorder %s25, 1
      %p116 = por %p114, %p115
      %p117 = scmp.ne.s32.totalorder %s106, %s107
      %p118 = scmp.eq.s32.totalorder %s25, 0
      %p119 = por %p117, %p118
      %p120 = scmp.ne.s32.totalorder %s106, %s107
      %p121 = scmp.eq.s32.totalorder %s26, 1
      %p122 = por %p120, %p121
      %p124 = scmp.ne.s32.totalorder %s107, %s123
      %p125 = scmp.eq.s32.totalorder %s26, 0
      %p126 = por %p124, %p125
      %s128 = sadd.s32 %s127, 1
      %p131 = scmp.eq.s32.totalorder %s20, 1
      %p132 = scmp.ne.s32.totalorder %s127, %s129
      %p133 = scmp.eq.s32.totalorder %s20, 0
      %p134 = por %p132, %p133
      %p135 = scmp.ne.s32.totalorder %s127, %s129
      %p136 = scmp.eq.s32.totalorder %s25, 1
      %p137 = por %p135, %p136
      %p138 = scmp.ne.s32.totalorder %s129, %s130
      %p139 = scmp.eq.s32.totalorder %s25, 0
      %p140 = por %p138, %p139
      %p141 = scmp.ne.s32.totalorder %s129, %s130
      %p142 = scmp.eq.s32.totalorder %s26, 1
      %p143 = por %p141, %p142
      %p145 = scmp.ne.s32.totalorder %s130, %s144
      %p146 = scmp.eq.s32.totalorder %s26, 0
      %p147 = por %p145, %p146
      %s149 = sadd.s32 %s148, 1
      %p152 = scmp.eq.s32.totalorder %s20, 1
      %p153 = scmp.ne.s32.totalorder %s148, %s150
      %p154 = scmp.eq.s32.totalorder %s20, 0
      %p155 = por %p153, %p154
      %p156 = scmp.ne.s32.totalorder %s148, %s150
      %p157 = scmp.eq.s32.totalorder %s25, 1
      %p158 = por %p156, %p157
      %p159 = scmp.ne.s32.totalorder %s150, %s151
      %p160 = scmp.eq.s32.totalorder %s25, 0
      %p161 = por %p159, %p160
      %p162 = scmp.ne.s32.totalorder %s150, %s151
      %p163 = scmp.eq.s32.totalorder %s26, 1
      %p164 = por %p162, %p163
      %p166 = scmp.ne.s32.totalorder %s151, %s165
      %p167 = scmp.eq.s32.totalorder %s26, 0
      %p168 = por %p166, %p167
      %s170 = sadd.s32 %s169, 1
      %p173 = scmp.eq.s32.totalorder %s20, 1
      %p174 = scmp.ne.s32.totalorder %s169, %s171
      %p175 = scmp.eq.s32.totalorder %s20, 0
      %p176 = por %p174, %p175
      %p177 = scmp.ne.s32.totalorder %s169, %s171
      %p178 = scmp.eq.s32.totalorder %s25, 1
      %p179 = por %p177, %p178
      %p180 = scmp.ne.s32.totalorder %s171, %s172
      %p181 = scmp.eq.s32.totalorder %s25, 0
      %p182 = por %p180, %p181
      %p183 = scmp.ne.s32.totalorder %s171, %s172
      %p184 = scmp.eq.s32.totalorder %s26, 1
      %p185 = por %p183, %p184
      %p187 = scmp.ne.s32.totalorder %s172, %s186
      %p188 = scmp.eq.s32.totalorder %s26, 0
      %p189 = por %p187, %p188
      %s191 = sadd.s32 %s190, 1
      %p194 = scmp.eq.s32.totalorder %s20, 1
      %p195 = scmp.ne.s32.totalorder %s190, %s192
      %p196 = scmp.eq.s32.totalorder %s20, 0
      %p197 = por %p195, %p196
      %p198 = scmp.ne.s32.totalorder %s190, %s192
      %p199 = scmp.eq.s32.totalorder %s25, 1
      %p200 = por %p198, %p199
      %p201 = scmp.ne.s32.totalorder %s192, %s193
      %p202 = scmp.eq.s32.totalorder %s25, 0
      %p203 = por %p201, %p202
      %p204 = scmp.ne.s32.totalorder %s192, %s193
      %p205 = scmp.eq.s32.totalorder %s26, 1
      %p206 = por %p204, %p205
      %p208 = scmp.ne.s32.totalorder %s193, %s207
      %p209 = scmp.eq.s32.totalorder %s26, 0
      %p210 = por %p208, %p209
      %s212 = sadd.s32 %s211, 1
      %p215 = scmp.eq.s32.totalorder %s20, 1
      %p216 = scmp.ne.s32.totalorder %s211, %s213
      %p217 = scmp.eq.s32.totalorder %s20, 0
      %p218 = por %p216, %p217
      %p219 = scmp.ne.s32.totalorder %s211, %s213
      %p220 = scmp.eq.s32.totalorder %s25, 1
      %p221 = por %p219, %p220
      %p222 = scmp.ne.s32.totalorder %s213, %s214
      %p223 = scmp.eq.s32.totalorder %s25, 0
      %p224 = por %p222, %p223
      %p225 = scmp.ne.s32.totalorder %s213, %s214
      %p226 = scmp.eq.s32.totalorder %s26, 1
      %p227 = por %p225, %p226
      %p229 = scmp.ne.s32.totalorder %s214, %s228
      %p230 = scmp.eq.s32.totalorder %s26, 0
      %p231 = por %p229, %p230
      %s233 = sadd.s32 %s232, 1
      %p236 = scmp.eq.s32.totalorder %s20, 1
      %p237 = scmp.ne.s32.totalorder %s232, %s234
      %p238 = scmp.eq.s32.totalorder %s20, 0
      %p239 = por %p237, %p238
      %p240 = scmp.ne.s32.totalorder %s232, %s234
      %p241 = scmp.eq.s32.totalorder %s25, 1
      %p242 = por %p240, %p241
      %p243 = scmp.ne.s32.totalorder %s234, %s235
      %p244 = scmp.eq.s32.totalorder %s25, 0
      %p245 = por %p243, %p244
      %p246 = scmp.ne.s32.totalorder %s234, %s235
      %p247 = scmp.eq.s32.totalorder %s26, 1
      %p248 = por %p246, %p247
      %p250 = scmp.ne.s32.totalorder %s235, %s249
      %p251 = scmp.eq.s32.totalorder %s26, 0
      %p252 = por %p250, %p251
      %s254 = sadd.s32 %s253, 1
      %p257 = scmp.eq.s32.totalorder %s20, 1
      %p258 = scmp.ne.s32.totalorder %s253, %s255
      %p259 = scmp.eq.s32.totalorder %s20, 0
      %p260 = por %p258, %p259
      %p261 = scmp.ne.s32.totalorder %s253, %s255
      %p262 = scmp.eq.s32.totalorder %s25, 1
      %p263 = por %p261, %p262
      %p264 = scmp.ne.s32.totalorder %s255, %s256
      %p265 = scmp.eq.s32.totalorder %s25, 0
      %p266 = por %p264, %p265
      %p267 = scmp.ne.s32.totalorder %s255, %s256
      %p268 = scmp.eq.s32.totalorder %s26, 1
      %p269 = por %p267, %p268
      %p271 = scmp.ne.s32.totalorder %s256, %s270
      %p272 = scmp.eq.s32.totalorder %s26, 0
      %p273 = por %p271, %p272
      %s275 = sadd.s32 %s274, 1
      %p278 = scmp.eq.s32.totalorder %s20, 1
      %p279 = scmp.ne.s32.totalorder %s274, %s276
      %p280 = scmp.eq.s32.totalorder %s20, 0
      %p281 = por %p279, %p280
      %p282 = scmp.ne.s32.totalorder %s274, %s276
      %p283 = scmp.eq.s32.totalorder %s25, 1
      %p284 = por %p282, %p283
      %p285 = scmp.ne.s32.totalorder %s276, %s277
      %p286 = scmp.eq.s32.totalorder %s25, 0
      %p287 = por %p285, %p286
      %p288 = scmp.ne.s32.totalorder %s276, %s277
      %p289 = scmp.eq.s32.totalorder %s26, 1
      %p290 = por %p288, %p289
      %p292 = scmp.ne.s32.totalorder %s277, %s291
      %p293 = scmp.eq.s32.totalorder %s26, 0
      %p294 = por %p292, %p293
      %s296 = sadd.s32 %s295, 1
      %p299 = scmp.eq.s32.totalorder %s20, 1
      %p300 = scmp.ne.s32.totalorder %s295, %s297
      %p301 = scmp.eq.s32.totalorder %s20, 0
      %p302 = por %p300, %p301
      %p303 = scmp.ne.s32.totalorder %s295, %s297
      %p304 = scmp.eq.s32.totalorder %s25, 1
      %p305 = por %p303, %p304
      %p306 = scmp.ne.s32.totalorder %s297, %s298
      %p307 = scmp.eq.s32.totalorder %s25, 0
      %p308 = por %p306, %p307
      %p309 = scmp.ne.s32.totalorder %s297, %s298
      %p310 = scmp.eq.s32.totalorder %s26, 1
      %p311 = por %p309, %p310
      %p313 = scmp.ne.s32.totalorder %s298, %s312
      %p314 = scmp.eq.s32.totalorder %s26, 0
      %p315 = por %p313, %p314
      %s316 = ssub.s32 %s20, %s27
      %p317 = scmp.eq.s32.totalorder %s316, 0
      %s319 = sadd.s32 %s318, 1
      %s320 = scalar_select %p317, %s318, %s319
      %p323 = pneg %p317
      %p324 = scmp.eq.s32.totalorder %s20, 1
      %p325 = por %p323, %p324
      %p326 = scmp.ne.s32.totalorder %s318, %s321
      %p327 = scmp.eq.s32.totalorder %s20, 0
      %p328 = por %p326, %p327
      %p329 = scmp.ne.s32.totalorder %s318, %s321
      %p330 = scmp.eq.s32.totalorder %s25, 1
      %p331 = por %p329, %p330
      %p332 = scmp.ne.s32.totalorder %s321, %s322
      %p333 = scmp.eq.s32.totalorder %s25, 0
      %p334 = por %p332, %p333
      %p335 = scmp.ne.s32.totalorder %s321, %s322
      %p336 = scmp.eq.s32.totalorder %s26, 1
      %p337 = por %p335, %p336
      %p339 = scmp.ne.s32.totalorder %s322, %s338
      %p340 = scmp.eq.s32.totalorder %s26, 0
      %p341 = por %p339, %p340
      %p342 = scmp.le.s32.totalorder 1, %s20
      %p343 = scmp.lt.s32.totalorder %s20, 3
      %p344 = pnand %p342, %p343
      %p345 = pneg %p344
      // Predicated region
      $region9: #{diffusion_predic_forward.1} parent=5 // pred_check
        _
      $region10: #{diffusion_predic_forward.1} parent=5 // pred_check_branch
        %347 = sbr.rel (%p344) target = $region12
      $region11: #{diffusion_predic_forward.1} parent=5 // pred_region
        %s348 = ssub.s32 %s20, 1
        // Predicated region
        $region13: #{diffusion_predic_forward.1} parent=11 // pred_check
          %p349 = pneg %p41
        $region14: #{diffusion_predic_forward.1} parent=11 // pred_check_branch
          %351 = sbr.rel (%p349) target = $region16
        $region15: #{diffusion_predic_forward.1} parent=11 // pred_region
          %353 = vsyncadd [#allocation3], 0
          %s355 = sshll.u32 %s0, 4
          %s356 = int_to_ptr.vmem [resolvable:$true] %s355
          %358 = dma.vmem_to_smem %s356, 16, [#allocation2], [#allocation3]
        $region16: #{diffusion_predic_forward.1} parent=11 // pred_fallthru
          _
        // Predicated region
        $region17: #{diffusion_predic_forward.1} parent=11 // pred_check
          %p359 = pneg %p140
        $region18: #{diffusion_predic_forward.1} parent=11 // pred_check_branch
          %361 = sbr.rel (%p359) target = $region20
        $region19: #{diffusion_predic_forward.1} parent=11 // pred_region
          _
        $region20: #{diffusion_predic_forward.1} parent=11 // pred_fallthru
          _
        // Predicated region
        $region21: #{diffusion_predic_forward.1} parent=11 // pred_check
          %p362 = pneg %p161
        $region22: #{diffusion_predic_forward.1} parent=11 // pred_check_branch
          %364 = sbr.rel (%p362) target = $region24
        $region23: #{diffusion_predic_forward.1} parent=11 // pred_region
          _
        $region24: #{diffusion_predic_forward.1} parent=11 // pred_fallthru
          _
        // Predicated region
        $region25: #{diffusion_predic_forward.1} parent=11 // pred_check
          %p365 = pneg %p182
        $region26: #{diffusion_predic_forward.1} parent=11 // pred_check_branch
          %367 = sbr.rel (%p365) target = $region28
        $region27: #{diffusion_predic_forward.1} parent=11 // pred_region
          _
        $region28: #{diffusion_predic_forward.1} parent=11 // pred_fallthru
          _
        // Predicated region
        $region29: #{diffusion_predic_forward.1} parent=11 // pred_check
          %p368 = pneg %p203
        $region30: #{diffusion_predic_forward.1} parent=11 // pred_check_branch
          %370 = sbr.rel (%p368) target = $region32
        $region31: #{diffusion_predic_forward.1} parent=11 // pred_region
          _
        $region32: #{diffusion_predic_forward.1} parent=11 // pred_fallthru
          _
        // Predicated region
        $region33: #{diffusion_predic_forward.1} parent=11 // pred_check
          %p371 = pneg %p224
        $region34: #{diffusion_predic_forward.1} parent=11 // pred_check_branch
          %373 = sbr.rel (%p371) target = $region36
        $region35: #{diffusion_predic_forward.1} parent=11 // pred_region
          _
        $region36: #{diffusion_predic_forward.1} parent=11 // pred_fallthru
          _
        // Predicated region
        $region37: #{diffusion_predic_forward.1} parent=11 // pred_check
          %p374 = pneg %p245
        $region38: #{diffusion_predic_forward.1} parent=11 // pred_check_branch
          %376 = sbr.rel (%p374) target = $region40
        $region39: #{diffusion_predic_forward.1} parent=11 // pred_region
          _
        $region40: #{diffusion_predic_forward.1} parent=11 // pred_fallthru
          _
        // Predicated region
        $region41: #{diffusion_predic_forward.1} parent=11 // pred_check
          %p377 = pneg %p266
        $region42: #{diffusion_predic_forward.1} parent=11 // pred_check_branch
          %379 = sbr.rel (%p377) target = $region44
        $region43: #{diffusion_predic_forward.1} parent=11 // pred_region
          _
        $region44: #{diffusion_predic_forward.1} parent=11 // pred_fallthru
          _
        // Predicated region
        $region45: #{diffusion_predic_forward.1} parent=11 // pred_check
          %p380 = pneg %p287
        $region46: #{diffusion_predic_forward.1} parent=11 // pred_check_branch
          %382 = sbr.rel (%p380) target = $region48
        $region47: #{diffusion_predic_forward.1} parent=11 // pred_region
          _
        $region48: #{diffusion_predic_forward.1} parent=11 // pred_fallthru
          _
        // Predicated region
        $region49: #{diffusion_predic_forward.1} parent=11 // pred_check
          %p383 = pneg %p308
        $region50: #{diffusion_predic_forward.1} parent=11 // pred_check_branch
          %385 = sbr.rel (%p383) target = $region52
        $region51: #{diffusion_predic_forward.1} parent=11 // pred_region
          _
        $region52: #{diffusion_predic_forward.1} parent=11 // pred_fallthru
          _
      $region12: #{diffusion_predic_forward.1} parent=5 // pred_fallthru
        _
      %p386 = scmp.lt.s32.totalorder %s20, 2
      // Predicated region
      $region53: #{diffusion_predic_forward.1} parent=5 // pred_check
        %p387 = pneg %p386
      $region54: #{diffusion_predic_forward.1} parent=5 // pred_check_branch
        %389 = sbr.rel (%p387) target = $region56
      $region55: #{diffusion_predic_forward.1} parent=5 // pred_region
        // Predicated region
        $region57: #{diffusion_predic_forward.1} parent=55 // pred_check
          %p390 = pneg %p61
        $region58: #{diffusion_predic_forward.1} parent=55 // pred_check_branch
          %392 = sbr.rel (%p390) target = $region60
        $region59: #{diffusion_predic_forward.1} parent=55 // pred_region
          %p393 = scmp.lt.s32.totalorder %s20, 1
          %s394 = scalar_select %p393, %s20, 1
          %s395 = scalar_lea.vmem %s1, %s394
        $region60: #{diffusion_predic_forward.1} parent=55 // pred_fallthru
          _
        // Predicated region
        $region61: #{diffusion_predic_forward.1} parent=55 // pred_check
          %p396 = pneg %p87
        $region62: #{diffusion_predic_forward.1} parent=55 // pred_check_branch
          %398 = sbr.rel (%p396) target = $region64
        $region63: #{diffusion_predic_forward.1} parent=55 // pred_region
          %p399 = scmp.lt.s32.totalorder %s20, 1
          %s400 = scalar_select %p399, %s20, 1
          %s401 = smul.addr %s400, 4
          %s402 = scalar_lea.vmem %s2, %s401
        $region64: #{diffusion_predic_forward.1} parent=55 // pred_fallthru
          _
        // Predicated region
        $region65: #{diffusion_predic_forward.1} parent=55 // pred_check
          %p403 = pneg %p113
        $region66: #{diffusion_predic_forward.1} parent=55 // pred_check_branch
          %405 = sbr.rel (%p403) target = $region68
        $region67: #{diffusion_predic_forward.1} parent=55 // pred_region
          %p406 = scmp.lt.s32.totalorder %s20, 1
          %s407 = scalar_select %p406, %s20, 1
          %s408 = smul.addr %s407, 4
          %s409 = scalar_lea.vmem %s3, %s408
        $region68: #{diffusion_predic_forward.1} parent=55 // pred_fallthru
          _
      $region56: #{diffusion_predic_forward.1} parent=5 // pred_fallthru
        _
      %p410 = scmp.le.s32.totalorder 1, %s20
      %p411 = scmp.lt.s32.totalorder %s20, 3
      %p412 = pnand %p410, %p411
      %p413 = pneg %p412
      // Predicated region
      $region69: #{diffusion_predic_forward.1} parent=5 // pred_check
        _
      $region70: #{diffusion_predic_forward.1} parent=5 // pred_check_branch
        %415 = sbr.rel (%p412) target = $region72
      $region71: #{diffusion_predic_forward.1} parent=5 // pred_region
        %s416 = ssub.s32 %s20, 1
        // Predicated region
        $region73: #{diffusion_predic_forward.1} parent=71 // pred_check
          %p417 = pneg %p41
        $region74: #{diffusion_predic_forward.1} parent=71 // pred_check_branch
          %419 = sbr.rel (%p417) target = $region76
        $region75: #{diffusion_predic_forward.1} parent=71 // pred_region
          %421 = dma.done [#allocation3], 16
        $region76: #{diffusion_predic_forward.1} parent=71 // pred_fallthru
          _
        %422 = sfence
        %p423 = pneg %p41
        %p424 = pneg %p38
        %p425 = scmp.lt.s32.totalorder %s25, 1
        %s426 = scalar_select %p425, %s25, 1
        %s427 = scalar_lea.vmem %s1, %s426
        %p428 = pneg %p67
        %p429 = pneg %p64
        %p430 = scmp.lt.s32.totalorder %s25, 1
        %s431 = scalar_select %p430, %s25, 1
        %s432 = smul.addr %s431, 4
        %s433 = scalar_lea.vmem %s2, %s432
        %p434 = pneg %p93
        %p435 = pneg %p90
        %p436 = scmp.lt.s32.totalorder %s25, 1
        %s437 = scalar_select %p436, %s25, 1
        %s438 = smul.addr %s437, 4
        %s439 = scalar_lea.vmem %s3, %s438
        %p440 = pneg %p119
        %p441 = pneg %p116
        %p442 = pneg %p140
        %p443 = pneg %p137
        %p444 = pneg %p161
        %p445 = pneg %p158
        %p446 = pneg %p182
        %p447 = pneg %p179
        %p448 = pneg %p203
        %p449 = pneg %p200
        %p450 = pneg %p224
        %p451 = pneg %p221
        %p452 = pneg %p245
        %p453 = pneg %p242
        %p454 = pneg %p266
        %p455 = pneg %p263
        %p456 = pneg %p287
        %p457 = pneg %p284
        %p458 = pneg %p308
        %p459 = pneg %p305
        %p460 = pneg %p334
        %p461 = pneg %p331
        %p462 = scmp.lt.s32.totalorder %s25, 1
        %s463 = scalar_select %p462, %s25, 1
        %s464 = smul.addr %s463, 4
        %s465 = scalar_lea.vmem %s13, %s464
        %p466 = scmp.lt.s32.totalorder %s25, 1
        %s467 = scalar_select %p466, %s25, 1
        %s468 = scalar_lea.vmem %s1, %s467
        %p469 = scmp.lt.s32.totalorder %s25, 1
        %s470 = scalar_select %p469, %s25, 1
        %s471 = smul.addr %s470, 4
        %s472 = scalar_lea.vmem %s2, %s471
        %p473 = scmp.lt.s32.totalorder %s25, 1
        %s474 = scalar_select %p473, %s25, 1
        %s475 = smul.addr %s474, 4
        %s476 = scalar_lea.vmem %s3, %s475
        %p477 = scmp.lt.s32.totalorder %s25, 1
        %s478 = scalar_select %p477, %s25, 1
        %s479 = smul.addr %s478, 4
        %s480 = scalar_lea.vmem %s13, %s479
        %s481 = sld [smem:[#allocation2]]
        %s482 = sld [smem:[#allocation2 + $0x1]]
        %v483 = vld [vmem:[%s472] sm:$0xf]
        %v484 = vld [vmem:[%s476] sm:$0xf]
        %v485 = vstv %s481
        %v486 = vmul.f32 %v485, %v483
        %v487 = vstv %s482
        %v488 = vmul.f32 %v487, %v484
        %v489 = vadd.f32 %v486, %v488
        %v490 = vld [vmem:[%s7] sm:$0xff]
        %v491 = vld [vmem:[%s7 + $0x8] sm:$0xff]
        %v492 = vld [vmem:[%s7 + $0x10] sm:$0xff]
        %v493 = vld [vmem:[%s7 + $0x18] sm:$0xff]
        %vm494 = vcmask 31744
        %v496 = vsel %vm494, %v490, 0
        %v499 = vsel %vm494, %v491, 0
        %v502 = vsel %vm494, %v492, 0
        %v505 = vsel %vm494, %v493, 0
        %vm507 = vcmask 1043456
        %v509 = vsel %vm507, %v489, 0
        %511 = vmatpush.msra.mxu0 0.0
        %512 = vmatpush.msra.mxu0 0.0
        %513 = vmatpush.msra.mxu0 0.0
        %514 = vmatpush.msra.mxu0 0.0
        %515 = vmatpush.msra.mxu0 0.0
        %516 = vmatpush.msra.mxu0 0.0
        %517 = vmatpush.msra.mxu0 0.0
        %518 = vmatpush.msra.mxu0 0.0
        %519 = vmatpush.msra.mxu0 0.0
        %520 = vmatpush.msra.mxu0 0.0
        %521 = vmatpush.msra.mxu0 0.0
        %522 = vmatpush.msra.mxu0 0.0
        %523 = vmatpush.msra.mxu0 0.0
        %524 = vmatpush.msra.mxu0 0.0
        %525 = vmatpush.msra.mxu0 0.0
        %526 = vmatpush.msra.mxu0 %v509
        %527 = vmatmul.f32.gmra.mxu0 %v496
        %v528 = vpop.f32.mrf.mxu0
        %v529 = vadd.f32 0.0, %v528
        %530 = vmatmul.f32.gmra.mxu0 %v499
        %v531 = vpop.f32.mrf.mxu0
        %v532 = vadd.f32 0.0, %v531
        %533 = vmatmul.f32.gmra.mxu0 %v502
        %v534 = vpop.f32.mrf.mxu0
        %v535 = vadd.f32 0.0, %v534
        %536 = vmatmul.f32.gmra.mxu0 %v505
        %v537 = vpop.f32.mrf.mxu0
        %v538 = vadd.f32 0.0, %v537
        %539 = vdwg.mxu0
        %v540 = vld [vmem:[%s9] sm:$0xff]
        %v541 = vld [vmem:[%s9 + $0x8] sm:$0xff]
        %v542 = vld [vmem:[%s9 + $0x10] sm:$0xff]
        %v543 = vld [vmem:[%s9 + $0x18] sm:$0xff]
        %v544 = vld [vmem:[%s8] sm:$0xff]
        %v545 = vld [vmem:[%s8 + $0x8] sm:$0xff]
        %v546 = vld [vmem:[%s8 + $0x10] sm:$0xff]
        %v547 = vld [vmem:[%s8 + $0x18] sm:$0xff]
        %v548 = vld [vmem:[%s468] sm:$0x1]
        %550 = vset.pattern.permute.xlu0 0
        %551 = vperm.xlu0 %550, %v544
        %v552 = vpop.permute.xlu0 %551
        %555 = vset.pattern.permute.xlu0 0
        %556 = vperm.xlu0 %555, %v545
        %v557 = vpop.permute.xlu0 %556
        %560 = vset.pattern.permute.xlu0 0
        %561 = vperm.xlu0 %560, %v546
        %v562 = vpop.permute.xlu0 %561
        %565 = vset.pattern.permute.xlu0 0
        %566 = vperm.xlu0 %565, %v547
        %v567 = vpop.permute.xlu0 %566
        %v570 = vperm.slane %v548, 0
        %v572 = vmul.f32 %v552, %v570
        %v573 = vmul.f32 %v557, %v570
        %v574 = vmul.f32 %v562, %v570
        %v575 = vmul.f32 %v567, %v570
        %577 = vset.pattern.permute.xlu0 0
        %578 = vperm.xlu0 %577, %v540
        %v579 = vpop.permute.xlu0 %578
        %582 = vset.pattern.permute.xlu0 0
        %583 = vperm.xlu0 %582, %v541
        %v584 = vpop.permute.xlu0 %583
        %587 = vset.pattern.permute.xlu0 0
        %588 = vperm.xlu0 %587, %v542
        %v589 = vpop.permute.xlu0 %588
        %592 = vset.pattern.permute.xlu0 0
        %593 = vperm.xlu0 %592, %v543
        %v594 = vpop.permute.xlu0 %593
        %v596 = vadd.f32 %v579, %v572
        %v597 = vadd.f32 %v584, %v573
        %v598 = vadd.f32 %v589, %v574
        %v599 = vadd.f32 %v594, %v575
        %v600 = vld [vmem:[%s6] sm:$0x1]
        %v602 = vperm.slane %v600, 0
        %v604 = vmul.f32 %v596, %v602
        %v605 = vmul.f32 %v597, %v602
        %v606 = vmul.f32 %v598, %v602
        %v607 = vmul.f32 %v599, %v602
        %v608 = vld [vmem:[%s5] sm:$0xff]
        %v609 = vld [vmem:[%s5 + $0x8] sm:$0xff]
        %v610 = vld [vmem:[%s5 + $0x10] sm:$0xff]
        %v611 = vld [vmem:[%s5 + $0x18] sm:$0xff]
        %v612 = vld [vmem:[%s5 + $0x20] sm:$0xff]
        %v613 = vld [vmem:[%s5 + $0x28] sm:$0xff]
        %v614 = vld [vmem:[%s5 + $0x30] sm:$0xff]
        %v615 = vld [vmem:[%s5 + $0x38] sm:$0xff]
        %v616 = vld [vmem:[%s5 + $0x40] sm:$0xff]
        %v617 = vld [vmem:[%s5 + $0x48] sm:$0xff]
        %v618 = vld [vmem:[%s5 + $0x50] sm:$0xff]
        %v619 = vld [vmem:[%s5 + $0x58] sm:$0xff]
        %v620 = vld [vmem:[%s5 + $0x60] sm:$0xff]
        %v621 = vld [vmem:[%s5 + $0x68] sm:$0xff]
        %v622 = vld [vmem:[%s5 + $0x70] sm:$0xff]
        %v623 = vld [vmem:[%s5 + $0x78] sm:$0xff]
        %624 = vmatpush.msra.mxu0 %v623
        %625 = vmatpush.msra.mxu0 %v622
        %626 = vmatpush.msra.mxu0 %v621
        %627 = vmatpush.msra.mxu0 %v620
        %628 = vmatpush.msra.mxu0 %v619
        %629 = vmatpush.msra.mxu0 %v618
        %630 = vmatpush.msra.mxu0 %v617
        %631 = vmatpush.msra.mxu0 %v616
        %632 = vmatpush.msra.mxu0 %v615
        %633 = vmatpush.msra.mxu0 %v614
        %634 = vmatpush.msra.mxu0 %v613
        %635 = vmatpush.msra.mxu0 %v612
        %636 = vmatpush.msra.mxu0 %v611
        %637 = vmatpush.msra.mxu0 %v610
        %638 = vmatpush.msra.mxu0 %v609
        %639 = vmatpush.msra.mxu0 %v608
        %640 = vmatmul.f32.gmra.mxu0 %v529
        %v641 = vpop.f32.mrf.mxu0
        %v642 = vadd.f32 %v604, %v641
        %643 = vmatmul.f32.gmra.mxu0 %v532
        %v644 = vpop.f32.mrf.mxu0
        %v645 = vadd.f32 %v605, %v644
        %646 = vmatmul.f32.gmra.mxu0 %v535
        %v647 = vpop.f32.mrf.mxu0
        %v648 = vadd.f32 %v606, %v647
        %649 = vmatmul.f32.gmra.mxu0 %v538
        %v650 = vpop.f32.mrf.mxu0
        %v651 = vadd.f32 %v607, %v650
        %652 = vdwg.mxu0
        %v653 = vld [vmem:[%s10] sm:$0xff]
        %v654 = vld [vmem:[%s10 + $0x8] sm:$0xff]
        %v655 = vld [vmem:[%s10 + $0x10] sm:$0xff]
        %v656 = vld [vmem:[%s10 + $0x18] sm:$0xff]
        %658 = vset.pattern.permute.xlu0 0
        %659 = vperm.xlu0 %658, %v653
        %v660 = vpop.permute.xlu0 %659
        %663 = vset.pattern.permute.xlu0 0
        %664 = vperm.xlu0 %663, %v654
        %v665 = vpop.permute.xlu0 %664
        %668 = vset.pattern.permute.xlu0 0
        %669 = vperm.xlu0 %668, %v655
        %v670 = vpop.permute.xlu0 %669
        %673 = vset.pattern.permute.xlu0 0
        %674 = vperm.xlu0 %673, %v656
        %v675 = vpop.permute.xlu0 %674
        %v677 = vadd.f32 %v642, %v660
        %v678 = vadd.f32 %v645, %v665
        %v679 = vadd.f32 %v648, %v670
        %v680 = vadd.f32 %v651, %v675
        %v681 = vld [vmem:[%s11] sm:$0xf]
        %vm682 = vcmask 261120
        %v684 = vsel %vm682, %v681, 0
        %686 = vmatpush.msra.mxu0 0.0
        %687 = vmatpush.msra.mxu0 0.0
        %688 = vmatpush.msra.mxu0 0.0
        %689 = vmatpush.msra.mxu0 0.0
        %690 = vmatpush.msra.mxu0 0.0
        %691 = vmatpush.msra.mxu0 0.0
        %692 = vmatpush.msra.mxu0 0.0
        %693 = vmatpush.msra.mxu0 0.0
        %694 = vmatpush.msra.mxu0 0.0
        %695 = vmatpush.msra.mxu0 0.0
        %696 = vmatpush.msra.mxu0 0.0
        %697 = vmatpush.msra.mxu0 0.0
        %698 = vmatpush.msra.mxu0 %v680
        %699 = vmatpush.msra.mxu0 %v679
        %700 = vmatpush.msra.mxu0 %v678
        %701 = vmatpush.msra.mxu0 %v677
        %702 = vmatmul.f32.gmra.mxu0 %v684
        %v703 = vpop.f32.mrf.mxu0
        %v704 = vadd.f32 0.0, %v703
        %705 = vdwg.mxu0
        %v706 = vld [vmem:[%s4] sm:$0xff]
        %v707 = vld [vmem:[%s4 + $0x8] sm:$0xff]
        %v708 = vld [vmem:[%s4 + $0x10] sm:$0xff]
        %v709 = vld [vmem:[%s4 + $0x18] sm:$0xff]
        %v710 = vld [vmem:[%s4 + $0x20] sm:$0xff]
        %v711 = vld [vmem:[%s4 + $0x28] sm:$0xff]
        %v712 = vld [vmem:[%s4 + $0x30] sm:$0xff]
        %v713 = vld [vmem:[%s4 + $0x38] sm:$0xff]
        %v714 = vld [vmem:[%s4 + $0x40] sm:$0xff]
        %v715 = vld [vmem:[%s4 + $0x48] sm:$0xff]
        %v716 = vld [vmem:[%s4 + $0x50] sm:$0xff]
        %v717 = vld [vmem:[%s4 + $0x58] sm:$0xff]
        %v718 = vld [vmem:[%s4 + $0x60] sm:$0xff]
        %v719 = vld [vmem:[%s4 + $0x68] sm:$0xff]
        %v720 = vld [vmem:[%s4 + $0x70] sm:$0xff]
        %v721 = vld [vmem:[%s4 + $0x78] sm:$0xff]
        %v722 = vld [vmem:[%s12] sm:$0xf]
        %724 = vset.pattern.permute.xlu0 0
        %725 = vperm.xlu0 %724, %v722
        %v726 = vpop.permute.xlu0 %725
        %728 = vmatpush.msra.mxu0 %v721
        %729 = vmatpush.msra.mxu0 %v720
        %730 = vmatpush.msra.mxu0 %v719
        %731 = vmatpush.msra.mxu0 %v718
        %732 = vmatpush.msra.mxu0 %v717
        %733 = vmatpush.msra.mxu0 %v716
        %734 = vmatpush.msra.mxu0 %v715
        %735 = vmatpush.msra.mxu0 %v714
        %736 = vmatpush.msra.mxu0 %v713
        %737 = vmatpush.msra.mxu0 %v712
        %738 = vmatpush.msra.mxu0 %v711
        %739 = vmatpush.msra.mxu0 %v710
        %740 = vmatpush.msra.mxu0 %v709
        %741 = vmatpush.msra.mxu0 %v708
        %742 = vmatpush.msra.mxu0 %v707
        %743 = vmatpush.msra.mxu0 %v706
        %744 = vmatmul.f32.gmra.mxu0 %v704
        %v745 = vpop.f32.mrf.mxu0
        %v746 = vadd.f32 %v726, %v745
        %747 = vdwg.mxu0
        %v748 = vtanh.pop %v746
        %749 = vst [vmem:[%s480] sm:$0xf] %v748
        %p750 = scmp.lt.s32.totalorder %s25, 1
        %s751 = scalar_select %p750, %s25, 1
        %s752 = smul.addr %s751, 4
        %s753 = scalar_lea.vmem %s13, %s752
        // Predicated region
        $region77: #{diffusion_predic_forward.1} parent=71 // pred_check
          %p754 = pneg %p331
        $region78: #{diffusion_predic_forward.1} parent=71 // pred_check_branch
          %756 = sbr.rel (%p754) target = $region80
        $region79: #{diffusion_predic_forward.1} parent=71 // pred_region
          _
        $region80: #{diffusion_predic_forward.1} parent=71 // pred_fallthru
          _
      $region72: #{diffusion_predic_forward.1} parent=5 // pred_fallthru
        _
      %p757 = scmp.le.s32.totalorder 2, %s20
      // Predicated region
      $region81: #{diffusion_predic_forward.1} parent=5 // pred_check
        %p758 = pneg %p757
      $region82: #{diffusion_predic_forward.1} parent=5 // pred_check_branch
        %760 = sbr.rel (%p758) target = $region84
      $region83: #{diffusion_predic_forward.1} parent=5 // pred_region
        %s761 = ssub.s32 %s20, 2
        // Predicated region
        $region85: #{diffusion_predic_forward.1} parent=83 // pred_check
          %p762 = pneg %p337
        $region86: #{diffusion_predic_forward.1} parent=83 // pred_check_branch
          %764 = sbr.rel (%p762) target = $region88
        $region87: #{diffusion_predic_forward.1} parent=83 // pred_region
          %p765 = scmp.lt.s32.totalorder %s26, 1
          %s766 = scalar_select %p765, %s26, 1
          %s767 = smul.addr %s766, 4
          %s768 = scalar_lea.vmem %s13, %s767
        $region88: #{diffusion_predic_forward.1} parent=83 // pred_fallthru
          _
      $region84: #{diffusion_predic_forward.1} parent=5 // pred_fallthru
        _
    $region6: #{diffusion_predic_forward.1} parent=1 // loop_footer
      %s24 = sadd.s32 1, %s20
    $region7: #{diffusion_predic_forward.1} parent=1 // loop_footer_branch
      %19 = sbr.rel target = $region3
    $region8: #{diffusion_predic_forward.1} parent=1 // loop_exit
      _
    %769 = vsyncpa [#allocation3], 1
    %s770 = scalar_lea.sflag [#allocation3], 1
    %771 = vsyncpa %s770, 1

</llo_original>
